<compile_context>
chip_gen: v7x
topology: tpu7x:2x2x1
jax: 0.10.0
libtpu: 0.0.40
codegen_flags: <defaults>
</compile_context>

<pallas_src>
import math
import re

import jax
import jax.numpy as jnp
import numpy as np
from jax import lax
from jax.experimental import pallas as pl
from jax.experimental.pallas import tpu as pltpu

NUM_GROUPS = 32   # normalization(channels) == GroupNorm32(32, channels)
EPS = 1e-5        # PyTorch GroupNorm default eps


# --------------------------------------------------------------------------
# Hardware-aware sizing helpers
# --------------------------------------------------------------------------
def _tpu_generation():
    """Best-effort TPU generation (5/6/7/...) for tile-size heuristics."""
    try:
        kind = jax.devices()[0].device_kind.lower()
    except Exception:
        return 6
    m = re.search(r"(\d+)", kind)
    return int(m.group(1)) if m else 6


def _vmem_cap_bytes():
    """Physical VMEM capacity minus ~12% headroom (≈56 MiB v7x, ≈112 MiB v5e/v6e)."""
    cap = 64 * 1024 * 1024
    try:
        info = pltpu.get_tpu_info()
        cap = int(getattr(info, "vmem_capacity_bytes", cap))
    except Exception:
        pass
    return max(cap * 7 // 8, 16 * 1024 * 1024)


def _vmem_limit(est_bytes, cap):
    """Block-footprint estimate + 50% headroom, clamped to physical capacity."""
    return int(min(max(est_bytes * 3 // 2, 32 * 1024 * 1024), cap))


def _pick_tile(t, candidates):
    for c in candidates:
        if c <= t and t % c == 0:
            return c
    return t  # fall back to the full extent (always a legal block size)


def _default_tiles(t, gen):
    # Phase B spatial tile (N dim of the fused QKV matmul): as big as is cheap.
    ts = _pick_tile(t, (512, 256, 128))
    # tk matched to the MXU: 256-wide on v6e/v7x, 128 on v5e and older.
    tk = _pick_tile(t, (256, 128) if gen >= 6 else (128,))
    # tq = streamed N dim of every attention matmul; larger on v6e (128 MiB VMEM).
    tq = _pick_tile(t, (512, 256, 128) if gen == 6 else (256, 128))
    return ts, tq, tk


# --------------------------------------------------------------------------
# Kernel A: GroupNorm per-channel sums (grid = (B, T // ts), reduction last).
# --------------------------------------------------------------------------
def _stats_kernel(x_ref, s1_ref, s2_ref):
    @pl.when(pl.program_id(1) == 0)
    def _():
        s1_ref[...] = jnp.zeros_like(s1_ref)
        s2_ref[...] = jnp.zeros_like(s2_ref)

    x = x_ref[0]                                           # (C, ts) f32
    # Lane-axis reductions only; accumulate directly into the resident output.
    s1_ref[0] += jnp.sum(x, axis=1, keepdims=True)         # (C, 1)
    s2_ref[0] += jnp.sum(x * x, axis=1, keepdims=True)     # (C, 1)


# --------------------------------------------------------------------------
# Kernel B: normalize + fused head-major q/k/v projection (one MXU call).
# --------------------------------------------------------------------------
def _make_norm_qkv_kernel(C):
    def kernel(x_ref, mean_ref, rstd_ref, gamma_ref, beta_ref, w_ref, b_ref,
               q_ref, k_ref, v_ref):
        x = x_ref[0]                                              # (C, ts) f32
        xn = (x - mean_ref[0]) * (rstd_ref[0] * gamma_ref[...]) + beta_ref[...]
        # Single fused (3C, C) @ (C, ts) matmul: one weight push per tile.
        qkv = jnp.dot(w_ref[...], xn.astype(jnp.bfloat16),
                      preferred_element_type=jnp.float32) + b_ref[...]
        q_ref[0] = qkv[:C].astype(jnp.bfloat16)
        k_ref[0] = qkv[C:2 * C].astype(jnp.bfloat16)
        v_ref[0] = qkv[2 * C:].astype(jnp.bfloat16)

    return kernel


# --------------------------------------------------------------------------
# Kernel C: flash attention (online softmax over key tiles) + proj + residual.
# K/V live in VMEM scratch, single-buffered, DMA'd once per batch.
# --------------------------------------------------------------------------
def _make_attn_proj_kernel(n_heads, ch, tq, tk, n_kt):
    kv_unroll = n_kt if n_kt <= 4 else 2

    def kernel(q_ref, x_ref, wproj_ref, bproj_ref, k_hbm, v_hbm, out_ref,
               k_buf, v_buf, acc_ref, m_ref, l_ref, sem):
        b = pl.program_id(0)

        # Land this batch's K/V in VMEM exactly once (single-buffered residency:
        # one exposed DMA per batch instead of double-buffered resident blocks).
        @pl.when(pl.program_id(1) == 0)
        def _():
            kcp = pltpu.make_async_copy(k_hbm.at[b], k_buf, sem.at[0])
            vcp = pltpu.make_async_copy(v_hbm.at[b], v_buf, sem.at[1])
            kcp.start()
            vcp.start()
            kcp.wait()
            vcp.wait()

        def head_step(h, carry):
            r0 = pl.multiple_of(h * ch, ch)                    # sublane-aligned
            q_h = q_ref[0, h]                                  # (ch, tq) bf16
            m_ref[...] = jnp.full(m_ref.shape, -jnp.inf, jnp.float32)
            l_ref[...] = jnp.zeros(l_ref.shape, jnp.float32)
            # Required: alpha=0 * stale Inf/NaN garbage would poison acc.
            acc_ref[pl.ds(r0, ch), :] = jnp.zeros((ch, tq), jnp.float32)

            def kv_step(kt, c2):
                c0 = pl.multiple_of(kt * tk, tk)
                k_t = k_buf[h, :, pl.ds(c0, tk)]               # (ch, tk) bf16
                v_t = v_buf[h, :, pl.ds(c0, tk)]               # (ch, tk) bf16
                # Logits with keys on sublanes, queries on lanes -> (tk, tq);
                # contraction over the small head dim, f32 accumulate.
                # TODO(synk): if Mosaic MLIR shows a per-tile vxpose on k_t here,
                # emit K time-major from Phase B (one transpose per element).
                s = lax.dot_general(k_t, q_h, (((0,), (0,)), ((), ())),
                                    preferred_element_type=jnp.float32)
                m_prev = m_ref[...]                            # (1, tq)
                m_new = jnp.maximum(m_prev, jnp.max(s, axis=0, keepdims=True))
                alpha = jnp.exp(m_prev - m_new)                # (1, tq)
                p = jnp.exp(s - m_new)                         # (tk, tq) f32
                l_ref[...] = alpha * l_ref[...] + jnp.sum(p, axis=0, keepdims=True)
                pv = jnp.dot(v_t, p.astype(jnp.bfloat16),
                             preferred_element_type=jnp.float32)  # (ch, tq)
                acc_ref[pl.ds(r0, ch), :] = (alpha * acc_ref[pl.ds(r0, ch), :]
                                             + pv)
                m_ref[...] = m_new
                return c2

            # Unrolled so iteration i+1's MXU work overlaps iteration i's exp.
            lax.fori_loop(0, n_kt, kv_step, 0, unroll=kv_unroll)

            inv_l = 1.0 / l_ref[...]        # exact recip: (1, tq), essentially free
            acc_ref[pl.ds(r0, ch), :] = acc_ref[pl.ds(r0, ch), :] * inv_l
            return carry

        # fori_loop over heads: bounded live ranges, constant code size.
        lax.fori_loop(0, n_heads, head_step, 0)

        # proj_out (1x1 conv) + bias + residual; residual x read only here.
        h_all = acc_ref[...].astype(jnp.bfloat16)              # (C, tq)
        hp = jnp.dot(wproj_ref[...], h_all, preferred_element_type=jnp.float32)
        out_ref[0] = x_ref[0] + hp + bproj_ref[...]

    return kernel


# --------------------------------------------------------------------------
# Wrapper
# --------------------------------------------------------------------------
def attention_block_forward(x_nchw, params, n_heads, *, tq=None, tk=None, ts=None):
    """Pallas implementation of AttentionBlock._forward. x_nchw: (B, C, H, W) f32."""
    B, C, H, W = x_nchw.shape
    T = H * W
    assert C % NUM_GROUPS == 0, "channels must be divisible by 32 (GroupNorm32)"
    assert C % n_heads == 0
    ch = C // n_heads
    assert ch % 8 == 0, "head dim must be a multiple of 8 (sublane alignment)"
    gs = C // NUM_GROUPS

    gen = _tpu_generation()
    cap = _vmem_cap_bytes()
    d_ts, d_tq, d_tk = _default_tiles(T, gen)
    ts = ts if ts is not None else d_ts
    tq = tq if tq is not None else d_tq
    tk = tk if tk is not None else d_tk
    assert T % ts == 0 and T % tq == 0 and T % tk == 0
    n_kt = T // tk

    x = x_nchw.reshape(B, C, T).astype(jnp.float32)

    # Fold the 1/sqrt(sqrt(ch)) attention scale into q/k weights & biases, and
    # pre-permute the fused qkv weight into head-major q/k/v row blocks stacked
    # into a single (3C, C) bf16 matrix (one MXU weight push in Phase B).
    scale = 1.0 / math.sqrt(math.sqrt(ch))
    w3 = params["wqkv"].reshape(n_heads, 3, ch, C).astype(jnp.float32)
    b3 = params["bqkv"].reshape(n_heads, 3, ch).astype(jnp.float32)
    w_qkv = jnp.concatenate([(w3[:, 0] * scale).reshape(C, C),
                             (w3[:, 1] * scale).reshape(C, C),
                             w3[:, 2].reshape(C, C)], axis=0).astype(jnp.bfloat16)
    b_qkv = jnp.concatenate([(b3[:, 0] * scale).reshape(C),
                             (b3[:, 1] * scale).reshape(C),
                             b3[:, 2].reshape(C)], axis=0).reshape(3 * C, 1)
    gamma = params["gamma"].reshape(C, 1).astype(jnp.float32)
    beta = params["beta"].reshape(C, 1).astype(jnp.float32)
    wproj = params["wproj"].astype(jnp.bfloat16)
    bproj = params["bproj"].reshape(C, 1).astype(jnp.float32)

    # ---- Phase A: per-channel sums over spatial tiles ----------------------
    est_a = 2 * C * ts * 4 + 4 * C * 4 + C * ts * 4
    s1, s2 = pl.pallas_call(
        _stats_kernel,
        out_shape=(jax.ShapeDtypeStruct((B, C, 1), jnp.float32),
                   jax.ShapeDtypeStruct((B, C, 1), jnp.float32)),
        grid_spec=pltpu.PrefetchScalarGridSpec(
            num_scalar_prefetch=0,
            grid=(B, T // ts),
            in_specs=[pl.BlockSpec((1, C, ts), lambda b, t: (b, 0, t))],
            out_specs=(pl.BlockSpec((1, C, 1), lambda b, t: (b, 0, 0)),
                       pl.BlockSpec((1, C, 1), lambda b, t: (b, 0, 0)))),
        compiler_params=pltpu.CompilerParams(
            dimension_semantics=("parallel", "arbitrary"),
            vmem_limit_bytes=_vmem_limit(est_a, cap)),
    )(x)

    # Tiny group reduce + broadcast back in plain JAX (O(B*C) work).
    # TODO(synk): one-pass E[x^2]-mean^2 can cancel for large-mean activations;
    # switch to a shifted/Welford combine if tighter GroupNorm parity is needed.
    inv_n = 1.0 / float(gs * T)
    mu_g = s1.reshape(B, NUM_GROUPS, gs).sum(axis=2) * inv_n
    ex2_g = s2.reshape(B, NUM_GROUPS, gs).sum(axis=2) * inv_n
    rstd_g = lax.rsqrt(ex2_g - mu_g * mu_g + EPS)
    mean = jnp.repeat(mu_g, gs, axis=1).reshape(B, C, 1)
    rstd = jnp.repeat(rstd_g, gs, axis=1).reshape(B, C, 1)

    # ---- Phase B: normalize + fused q/k/v projection -----------------------
    est_b = (2 * C * ts * 4                  # x blocks
             + 3 * 2 * C * ts * 2            # q/k/v output blocks (bf16)
             + 2 * 3 * C * C * 2             # fused weight
             + 6 * C * ts * 4                # qkv/xn temporaries
             + 16 * C * 4)                   # per-channel vectors
    stat_spec = pl.BlockSpec((1, C, 1), lambda b, t: (b, 0, 0))
    vec_spec = pl.BlockSpec((C, 1), lambda b, t: (0, 0))
    q, k, v = pl.pallas_call(
        _make_norm_qkv_kernel(C),
        out_shape=tuple(jax.ShapeDtypeStruct((B, C, T), jnp.bfloat16)
                        for _ in range(3)),
        grid_spec=pltpu.PrefetchScalarGridSpec(
            num_scalar_prefetch=0,
            grid=(B, T // ts),
            in_specs=[
                pl.BlockSpec((1, C, ts), lambda b, t: (b, 0, t)),    # x
                stat_spec, stat_spec,                                # mean, rstd
                vec_spec, vec_spec,                                  # gamma, beta
                pl.BlockSpec((3 * C, C), lambda b, t: (0, 0)),       # fused W
                pl.BlockSpec((3 * C, 1), lambda b, t: (0, 0)),       # fused bias
            ],
            out_specs=tuple(pl.BlockSpec((1, C, ts), lambda b, t: (b, 0, t))
                            for _ in range(3))),
        compiler_params=pltpu.CompilerParams(
            dimension_semantics=("parallel", "parallel"),
            vmem_limit_bytes=_vmem_limit(est_b, cap)),
    )(x, mean, rstd, gamma, beta, w_qkv, b_qkv)

    # Head-blocked views (free, contiguous reshapes): leading-dim head indexing
    # in Phase C avoids dynamic lane slicing entirely.
    q4 = q.reshape(B, n_heads, ch, T)
    k4 = k.reshape(B, n_heads, ch, T)
    v4 = v.reshape(B, n_heads, ch, T)

    # ---- Phase C: flash attention + proj_out + residual --------------------
    est_c = (2 * C * tq * 2                  # q blocks (bf16, double-buffered)
             + 2 * C * tq * 4                # x (residual) blocks
             + 2 * C * tq * 4                # output blocks
             + 2 * C * C * 2 + C * 4         # wproj, bproj
             + 2 * C * T * 2                 # K + V resident, SINGLE-buffered
             + C * tq * 4 + 2 * tq * 4       # acc / m / l scratch
             + 8 * tk * tq * 4)              # s/p temporaries (incl. unroll=2)
    out = pl.pallas_call(
        _make_attn_proj_kernel(n_heads, ch, tq, tk, n_kt),
        out_shape=jax.ShapeDtypeStruct((B, C, T), jnp.float32),
        grid_spec=pltpu.PrefetchScalarGridSpec(
            num_scalar_prefetch=0,
            grid=(B, T // tq),
            in_specs=[
                pl.BlockSpec((1, n_heads, ch, tq), lambda b, qi: (b, 0, 0, qi)),
                pl.BlockSpec((1, C, tq), lambda b, qi: (b, 0, qi)),  # residual x
                pl.BlockSpec((C, C), lambda b, qi: (0, 0)),          # wproj
                pl.BlockSpec((C, 1), lambda b, qi: (0, 0)),          # bproj
                pl.BlockSpec(memory_space=pl.ANY),                   # K (HBM)
                pl.BlockSpec(memory_space=pl.ANY),                   # V (HBM)
            ],
            out_specs=pl.BlockSpec((1, C, tq), lambda b, qi: (b, 0, qi)),
            scratch_shapes=[
                pltpu.VMEM((n_heads, ch, T), jnp.bfloat16),   # K resident
                pltpu.VMEM((n_heads, ch, T), jnp.bfloat16),   # V resident
                pltpu.VMEM((C, tq), jnp.float32),             # acc (all heads)
                pltpu.VMEM((1, tq), jnp.float32),             # running max
                pltpu.VMEM((1, tq), jnp.float32),             # running sum
                pltpu.SemaphoreType.DMA((2,)),
            ]),
        compiler_params=pltpu.CompilerParams(
            # q-tile axis must stay sequential: K/V are DMA'd at qi == 0 only.
            dimension_semantics=("parallel", "arbitrary"),
            vmem_limit_bytes=_vmem_limit(est_c, cap)),
    )(q4, x, wproj, bproj, k4, v4)

    return out.reshape(B, C, H, W)


# --------------------------------------------------------------------------
# Pure-JAX f32 reference mirroring the PyTorch module semantics.
# --------------------------------------------------------------------------
def attention_block_reference(x_nchw, params, n_heads):
    B, C, H, W = x_nchw.shape
    T = H * W
    x = x_nchw.reshape(B, C, T).astype(jnp.float32)
    G = NUM_GROUPS

    xg = x.reshape(B, G, (C // G) * T)
    mean = xg.mean(-1, keepdims=True)
    var = ((xg - mean) ** 2).mean(-1, keepdims=True)
    xn = ((xg - mean) / jnp.sqrt(var + EPS)).reshape(B, C, T)
    xn = xn * params["gamma"][None, :, None] + params["beta"][None, :, None]

    qkv = jnp.einsum('oc,bct->bot', params["wqkv"], xn) + params["bqkv"][None, :, None]

    ch = C // n_heads
    qkv_h = qkv.reshape(B * n_heads, 3 * ch, T)
    q, k, v = qkv_h[:, :ch], qkv_h[:, ch:2 * ch], qkv_h[:, 2 * ch:]
    scale = 1.0 / math.sqrt(math.sqrt(ch))
    w = jnp.einsum('bct,bcs->bts', q * scale, k * scale)
    w = jax.nn.softmax(w, axis=-1)
    a = jnp.einsum('bts,bcs->bct', w, v)
    h = a.reshape(B, C, T)

    hp = jnp.einsum('oc,bct->bot', params["wproj"], h) + params["bproj"][None, :, None]
    return (x + hp).reshape(B, C, H, W)


if __name__ == "__main__":
    # Small shapes: B=2, C=64 (divisible by 32 groups), H=W=16 -> T=256, 4 heads.
    B, C, H, W = 2, 64, 16, 16
    n_heads = 4

    key = jax.random.PRNGKey(0)
    kx, kg, kb, kw1, kb1, kw2, kb2 = jax.random.split(key, 7)

    x = jax.random.normal(kx, (B, C, H, W), dtype=jnp.float32)

    # Deterministic parameter init. NOTE: the PyTorch module zero-inits proj_out
    # (zero_module); we use small random values instead so the projection path
    # is actually exercised. Shapes match Conv1d(kernel_size=1) weights.
    params = {
        "gamma": 1.0 + 0.1 * jax.random.normal(kg, (C,), dtype=jnp.float32),
        "beta": 0.1 * jax.random.normal(kb, (C,), dtype=jnp.float32),
        "wqkv": 0.05 * jax.random.normal(kw1, (3 * C, C), dtype=jnp.float32),
        "bqkv": 0.05 * jax.random.normal(kb1, (3 * C,), dtype=jnp.float32),
        "wproj": 0.05 * jax.random.normal(kw2, (C, C), dtype=jnp.float32),
        "bproj": 0.05 * jax.random.normal(kb2, (C,), dtype=jnp.float32),
    }

    # Force 128-wide tiles so the small T=256 test exercises multiple q tiles,
    # multiple (unrolled) flash key-tile iterations, the fori_loop over heads,
    # and multiple spatial stat/qkv tiles.
    out = attention_block_forward(x, params, n_heads, tq=128, tk=128, ts=128)
    out = jax.block_until_ready(out)

    ref = attention_block_reference(x, params, n_heads)
    ref = jax.block_until_ready(ref)

    # bf16 MXU operands => loosen tolerance vs the f32 reference.
    np.testing.assert_allclose(np.asarray(out), np.asarray(ref),
                               rtol=2e-2, atol=2e-2)
    print("KERNEL_OK")
</pallas_src>

<mosaic_0001>
module attributes {stable_mosaic.version = 11 : i64} {
  func.func @_stats_kernel(%arg0: i32, %arg1: i32, %arg2: memref<1x64x128xf32, #tpu.memory_space<vmem>>, %arg3: memref<1x64x1xf32, #tpu.memory_space<vmem>>, %arg4: memref<1x64x1xf32, #tpu.memory_space<vmem>>) attributes {dimension_semantics = [#tpu.dimension_semantics<parallel>, #tpu.dimension_semantics<arbitrary>], iteration_bounds = array<i64: 2, 2>, scalar_prefetch = 0 : i64, scratch_operands = 0 : i64, tpu.core_type = #tpu.core_type<tc>, window_params = [{transform_indices = @transform_0, window_bounds = array<i64: 1, 64, 128>}, {transform_indices = @transform_1, window_bounds = array<i64: 1, 64, 1>}, {transform_indices = @transform_2, window_bounds = array<i64: 1, 64, 1>}]} {
    %c0_i32 = arith.constant 0 : i32
    %0 = arith.cmpi eq, %arg1, %c0_i32 : i32
    %1 = arith.extui %0 : i1 to i32
    %c0_i32_0 = arith.constant 0 : i32
    %2 = arith.cmpi ne, %1, %c0_i32_0 : i32
    scf.if %2 {
      %cst_16 = arith.constant 0.000000e+00 : f32
      %22 = vector.broadcast %cst_16 : f32 to vector<1x64x1xf32>
      %c0_17 = arith.constant 0 : index
      %c0_18 = arith.constant 0 : index
      %c0_19 = arith.constant 0 : index
      %23 = vector.load %arg3[%c0_17, %c0_18, %c0_19] : memref<1x64x1xf32, #tpu.memory_space<vmem>>, vector<1x64x1xf32>
      tpu.vector_store %arg3[%c0_17, %c0_18, %c0_19], %22 {strides = array<i32>} : memref<1x64x1xf32, #tpu.memory_space<vmem>>, vector<1x64x1xf32>,
      %cst_20 = arith.constant 0.000000e+00 : f32
      %24 = vector.broadcast %cst_20 : f32 to vector<1x64x1xf32>
      %c0_21 = arith.constant 0 : index
      %c0_22 = arith.constant 0 : index
      %c0_23 = arith.constant 0 : index
      %25 = vector.load %arg4[%c0_21, %c0_22, %c0_23] : memref<1x64x1xf32, #tpu.memory_space<vmem>>, vector<1x64x1xf32>
      tpu.vector_store %arg4[%c0_21, %c0_22, %c0_23], %24 {strides = array<i32>} : memref<1x64x1xf32, #tpu.memory_space<vmem>>, vector<1x64x1xf32>,
    } else {
    }
    %c0 = arith.constant 0 : index
    %c0_1 = arith.constant 0 : index
    %c0_2 = arith.constant 0 : index
    %3 = vector.load %arg2[%c0, %c0_1, %c0_2] : memref<1x64x128xf32, #tpu.memory_space<vmem>>, vector<1x64x128xf32>
    %4 = vector.shape_cast %3 : vector<1x64x128xf32> to vector<64x128xf32>
    %c0_3 = arith.constant 0 : index
    %c0_4 = arith.constant 0 : index
    %c0_5 = arith.constant 0 : index
    %5 = vector.load %arg3[%c0_3, %c0_4, %c0_5] : memref<1x64x1xf32, #tpu.memory_space<vmem>>, vector<1x64x1xf32>
    %6 = vector.shape_cast %5 : vector<1x64x1xf32> to vector<64x1xf32>
    %cst = arith.constant dense<0.000000e+00> : vector<64xf32>
    %7 = vector.multi_reduction <add>, %4, %cst [1] : vector<64x128xf32> to vector<64xf32>
    %8 = vector.shape_cast %7 : vector<64xf32> to vector<64x1xf32>
    %9 = arith.addf %6, %8 : vector<64x1xf32>
    %c0_6 = arith.constant 0 : index
    %c0_7 = arith.constant 0 : index
    %c0_8 = arith.constant 0 : index
    %10 = vector.load %arg3[%c0_6, %c0_7, %c0_8] : memref<1x64x1xf32, #tpu.memory_space<vmem>>, vector<1x64x1xf32>
    %11 = vector.shape_cast %10 : vector<1x64x1xf32> to vector<64x1xf32>
    %12 = vector.shape_cast %9 : vector<64x1xf32> to vector<1x64x1xf32>
    tpu.vector_store %arg3[%c0_6, %c0_7, %c0_8], %12 {strides = array<i32>} : memref<1x64x1xf32, #tpu.memory_space<vmem>>, vector<1x64x1xf32>,
    %c0_9 = arith.constant 0 : index
    %c0_10 = arith.constant 0 : index
    %c0_11 = arith.constant 0 : index
    %13 = vector.load %arg4[%c0_9, %c0_10, %c0_11] : memref<1x64x1xf32, #tpu.memory_space<vmem>>, vector<1x64x1xf32>
    %14 = vector.shape_cast %13 : vector<1x64x1xf32> to vector<64x1xf32>
    %15 = arith.mulf %4, %4 : vector<64x128xf32>
    %cst_12 = arith.constant dense<0.000000e+00> : vector<64xf32>
    %16 = vector.multi_reduction <add>, %15, %cst_12 [1] : vector<64x128xf32> to vector<64xf32>
    %17 = vector.shape_cast %16 : vector<64xf32> to vector<64x1xf32>
    %18 = arith.addf %14, %17 : vector<64x1xf32>
    %c0_13 = arith.constant 0 : index
    %c0_14 = arith.constant 0 : index
    %c0_15 = arith.constant 0 : index
    %19 = vector.load %arg4[%c0_13, %c0_14, %c0_15] : memref<1x64x1xf32, #tpu.memory_space<vmem>>, vector<1x64x1xf32>
    %20 = vector.shape_cast %19 : vector<1x64x1xf32> to vector<64x1xf32>
    %21 = vector.shape_cast %18 : vector<64x1xf32> to vector<1x64x1xf32>
    tpu.vector_store %arg4[%c0_13, %c0_14, %c0_15], %21 {strides = array<i32>} : memref<1x64x1xf32, #tpu.memory_space<vmem>>, vector<1x64x1xf32>,
    return
  }
  func.func @transform_0(%arg0: i32, %arg1: i32) -> (i32, i32, i32) {
    %c0_i32 = arith.constant 0 : i32
    %c0_i32_0 = arith.constant 0 : i32
    return %arg0, %c0_i32, %arg1 : i32, i32, i32
  }
  func.func @transform_1(%arg0: i32, %arg1: i32) -> (i32, i32, i32) {
    %c0_i32 = arith.constant 0 : i32
    %c0_i32_0 = arith.constant 0 : i32
    %c0_i32_1 = arith.constant 0 : i32
    return %arg0, %c0_i32, %c0_i32_0 : i32, i32, i32
  }
  func.func @transform_2(%arg0: i32, %arg1: i32) -> (i32, i32, i32) {
    %c0_i32 = arith.constant 0 : i32
    %c0_i32_0 = arith.constant 0 : i32
    %c0_i32_1 = arith.constant 0 : i32
    return %arg0, %c0_i32, %c0_i32_0 : i32, i32, i32
  }
}

</mosaic_0001>

<llo_original>
// kernel: tpu_custom_call.1
$region0: #{tpu_custom_call.1}
  #allocation0 [shape = 'u32[]', space=smem, size = 0x4, offset = 0x4, fixed_abs, tag = 'smem constant byte address 0x4 - core index']
  #allocation1 [shape = 'u32[144,128]{1,0:T(1,128)}', space=vmem, size = 0x12000, scoped, tag = 'internal scratch']
  %s0 = inlined_call_operand.hbm [shape: f32[2,64,256], index: 0, kind: input, shape index: {}]
  %s1 = inlined_call_operand.vmem [shape: f32[2,64,1], index: 1, kind: output, shape index: {0}]
  %s2 = inlined_call_operand.vmem [shape: f32[2,64,1], index: 2, kind: output, shape index: {1}]
  %3 = xla_tuple %s1, %s2
  %s4 = sld [smem:[#allocation0]]
  $region53: #{tpu_custom_call.1} parent=0
    _
  %s6 = ssub.s32 1, %s4
  %s7 = scalar_select 0, %s6, %s4
  $region1: #{tpu_custom_call.1} parent=0
    #allocation2 [shape = 'u8[65536]{0}', space=vmem, size = 0x10000, scoped, tag = 'input window, operand 0']
    #allocation3 [shape = 's32[2]{0}', space=sflag, size = 0x8, scoped, tag = 'scoped memory for tpu_custom_call.1']
    %8 = vsyncpa [#allocation3], 0
    %s9 = scalar_lea.sflag [#allocation3], 1
    %10 = vsyncpa %s9, 0
    loop: start=0, step=1, limit=6
    $region2: #{tpu_custom_call.1} parent=1 // loop_pre_header
      _
    $region3: #{tpu_custom_call.1} parent=1 // loop_header
      %s12 = sphi 0, %s16
      %p13 = scmp.ge.s32.totalorder %s12, 6
      %s19 = sphi 0, %s31
      %s20 = sphi 0, %s27
      %s21 = sphi 0, %s19
      %s22 = sphi 0, %s20
      %s23 = sphi 0, %s21
      %s24 = sphi 0, %s22
      %s36 = sphi 0, %s38
      %s39 = sphi 0, %s36
      %s40 = sphi 0, %s39
      %s56 = sphi 0, %s40
      %s62 = sphi 0, %s64
      %s65 = sphi 0, %s62
      %s66 = sphi 0, %s65
      %s82 = sphi 0, %s66
      %s88 = sphi 0, %s90
      %s91 = sphi 0, %s88
      %s92 = sphi 0, %s91
      %s108 = sphi 0, %s92
    $region4: #{tpu_custom_call.1} parent=1 // loop_header_branch
      %15 = sbr.rel (%p13) target = $region8
    $region5: #{tpu_custom_call.1} parent=1 // loop_body
      %s17 = ssub.s32 %s12, 1
      %s18 = ssub.s32 %s12, 2
      %s25 = sadd.s32 1, %s20
      %p26 = scmp.ge.s32.totalorder %s25, 2
      %s27 = scalar_select %p26, 0, %s25
      %s28 = sadd.s32 1, %s19
      %s29 = scalar_select %p26, %s28, %s19
      %p30 = scmp.ge.s32.totalorder %s29, 2
      %s31 = scalar_select %p30, 0, %s29
      %s32 = ssub.s32 %s19, %s31
      %s33 = ssub.s32 %s20, %s27
      %s34 = sor.u32 %s32, %s33
      %p35 = scmp.eq.s32.totalorder %s34, 0
      %s37 = sadd.s32 %s36, 1
      %s38 = scalar_select %p35, %s36, %s37
      %p41 = pneg %p35
      %p42 = scmp.eq.s32.totalorder %s12, 3
      %p43 = por %p41, %p42
      %p44 = scmp.ne.s32.totalorder %s36, %s39
      %p45 = scmp.eq.s32.totalorder %s12, 0
      %p46 = por %p44, %p45
      %p47 = scmp.ne.s32.totalorder %s36, %s39
      %p48 = scmp.eq.s32.totalorder %s17, 3
      %p49 = por %p47, %p48
      %p50 = scmp.ne.s32.totalorder %s39, %s40
      %p51 = scmp.eq.s32.totalorder %s17, 0
      %p52 = por %p50, %p51
      %p53 = scmp.ne.s32.totalorder %s39, %s40
      %p54 = scmp.eq.s32.totalorder %s18, 3
      %p55 = por %p53, %p54
      %p57 = scmp.ne.s32.totalorder %s40, %s56
      %p58 = scmp.eq.s32.totalorder %s18, 0
      %p59 = por %p57, %p58
      %s60 = ssub.s32 %s19, %s31
      %p61 = scmp.eq.s32.totalorder %s60, 0
      %s63 = sadd.s32 %s62, 1
      %s64 = scalar_select %p61, %s62, %s63
      %p67 = pneg %p61
      %p68 = scmp.eq.s32.totalorder %s12, 3
      %p69 = por %p67, %p68
      %p70 = scmp.ne.s32.totalorder %s62, %s65
      %p71 = scmp.eq.s32.totalorder %s12, 0
      %p72 = por %p70, %p71
      %p73 = scmp.ne.s32.totalorder %s62, %s65
      %p74 = scmp.eq.s32.totalorder %s17, 3
      %p75 = por %p73, %p74
      %p76 = scmp.ne.s32.totalorder %s65, %s66
      %p77 = scmp.eq.s32.totalorder %s17, 0
      %p78 = por %p76, %p77
      %p79 = scmp.ne.s32.totalorder %s65, %s66
      %p80 = scmp.eq.s32.totalorder %s18, 3
      %p81 = por %p79, %p80
      %p83 = scmp.ne.s32.totalorder %s66, %s82
      %p84 = scmp.eq.s32.totalorder %s18, 0
      %p85 = por %p83, %p84
      %s86 = ssub.s32 %s19, %s31
      %p87 = scmp.eq.s32.totalorder %s86, 0
      %s89 = sadd.s32 %s88, 1
      %s90 = scalar_select %p87, %s88, %s89
      %p93 = pneg %p87
      %p94 = scmp.eq.s32.totalorder %s12, 3
      %p95 = por %p93, %p94
      %p96 = scmp.ne.s32.totalorder %s88, %s91
      %p97 = scmp.eq.s32.totalorder %s12, 0
      %p98 = por %p96, %p97
      %p99 = scmp.ne.s32.totalorder %s88, %s91
      %p100 = scmp.eq.s32.totalorder %s17, 3
      %p101 = por %p99, %p100
      %p102 = scmp.ne.s32.totalorder %s91, %s92
      %p103 = scmp.eq.s32.totalorder %s17, 0
      %p104 = por %p102, %p103
      %p105 = scmp.ne.s32.totalorder %s91, %s92
      %p106 = scmp.eq.s32.totalorder %s18, 3
      %p107 = por %p105, %p106
      %p109 = scmp.ne.s32.totalorder %s92, %s108
      %p110 = scmp.eq.s32.totalorder %s18, 0
      %p111 = por %p109, %p110
      %p112 = scmp.le.s32.totalorder 1, %s12
      %p113 = scmp.lt.s32.totalorder %s12, 5
      %p114 = pnand %p112, %p113
      %p115 = pneg %p114
      // Predicated region
      $region9: #{tpu_custom_call.1} parent=5 // pred_check
        _
      $region10: #{tpu_custom_call.1} parent=5 // pred_check_branch
        %117 = sbr.rel (%p114) target = $region12
      $region11: #{tpu_custom_call.1} parent=5 // pred_region
        %s118 = ssub.s32 %s12, 1
      $region12: #{tpu_custom_call.1} parent=5 // pred_fallthru
        _
      %p119 = scmp.lt.s32.totalorder %s12, 4
      // Predicated region
      $region13: #{tpu_custom_call.1} parent=5 // pred_check
        %p120 = pneg %p119
      $region14: #{tpu_custom_call.1} parent=5 // pred_check_branch
        %122 = sbr.rel (%p120) target = $region16
      $region15: #{tpu_custom_call.1} parent=5 // pred_region
        // Predicated region
        $region17: #{tpu_custom_call.1} parent=15 // pred_check
          %p123 = pneg %p46
        $region18: #{tpu_custom_call.1} parent=15 // pred_check_branch
          %125 = sbr.rel (%p123) target = $region20
        $region19: #{tpu_custom_call.1} parent=15 // pred_region
          %s126 = sand.u32 %s36, 1
          %s127 = scalar_lea.sflag [#allocation3], %s126
          %s128 = sand.u32 %s36, 1
          %s129 = smul.addr %s128, 64
          %s130 = scalar_lea.vmem [#allocation2], %s129
          %s132 = ssub.s32 1024, 1024
          %133 = vsyncadd %s127, %s132
          %s134 = smul.addr %s19, 16
          %s135 = sadd.s32 %s20, %s134
          %s136 = smul.addr %s135, 128
          %s137 = scalar_lea.hbm %s0, %s136
          %s138 = sshll.u32 %s130, 4
          %s139 = int_to_ptr.vmem [resolvable:$true] %s138
          %144 = dma.hbm_to_vmem [thread:$0]  %s137, 1024, %s139, %s127, 256, 128, 8
        $region20: #{tpu_custom_call.1} parent=15 // pred_fallthru
          _
      $region16: #{tpu_custom_call.1} parent=5 // pred_fallthru
        _
      %p145 = scmp.le.s32.totalorder 1, %s12
      %p146 = scmp.lt.s32.totalorder %s12, 5
      %p147 = pnand %p145, %p146
      %p148 = pneg %p147
      // Predicated region
      $region21: #{tpu_custom_call.1} parent=5 // pred_check
        _
      $region22: #{tpu_custom_call.1} parent=5 // pred_check_branch
        %150 = sbr.rel (%p147) target = $region24
      $region23: #{tpu_custom_call.1} parent=5 // pred_region
        %s151 = ssub.s32 %s12, 1
        %s152 = sand.u32 %s39, 1
        %s153 = scalar_lea.sflag [#allocation3], %s152
        %s154 = sand.u32 %s39, 1
        %s155 = smul.addr %s154, 64
        %s156 = scalar_lea.vmem [#allocation2], %s155
        // Predicated region
        $region25: #{tpu_custom_call.1} parent=23 // pred_check
          %p157 = pneg %p52
        $region26: #{tpu_custom_call.1} parent=23 // pred_check_branch
          %159 = sbr.rel (%p157) target = $region28
        $region27: #{tpu_custom_call.1} parent=23 // pred_region
          %160 = dma.done %s153, 1024
        $region28: #{tpu_custom_call.1} parent=23 // pred_fallthru
          _
        %s161 = sand.u32 %s39, 1
        %s162 = scalar_lea.sflag [#allocation3], %s161
        %s163 = sand.u32 %s39, 1
        %s164 = smul.addr %s163, 64
        %s165 = scalar_lea.vmem [#allocation2], %s164
        %p166 = pneg %p52
        %p167 = pneg %p49
        %p168 = pneg %p78
        %p169 = pneg %p75
        %p170 = scmp.lt.s32.totalorder %s21, 1
        %s171 = scalar_select %p170, %s21, 1
        %s172 = smul.addr %s171, 8
        %s173 = smul.addr %s172, 8
        %s174 = scalar_lea.vmem %s1, %s173
        %p175 = pneg %p104
        %p176 = pneg %p101
        %p177 = scmp.lt.s32.totalorder %s21, 1
        %s178 = scalar_select %p177, %s21, 1
        %s179 = smul.addr %s178, 8
        %s180 = smul.addr %s179, 8
        %s181 = scalar_lea.vmem %s2, %s180
        %p182 = scmp.lt.s32.totalorder %s21, 1
        %s183 = scalar_select %p182, %s21, 1
        %s184 = smul.addr %s183, 8
        %s185 = smul.addr %s184, 8
        %s186 = scalar_lea.vmem %s1, %s185
        %p187 = scmp.lt.s32.totalorder %s21, 1
        %s188 = scalar_select %p187, %s21, 1
        %s189 = smul.addr %s188, 8
        %s190 = smul.addr %s189, 8
        %s191 = scalar_lea.vmem %s2, %s190
        %p192 = scmp.eq.s32.totalorder %s22, 0
        // Predicated region
        $region29: #{tpu_custom_call.1} parent=23 // pred_check
          %p193 = pneg %p192
        $region30: #{tpu_custom_call.1} parent=23 // pred_check_branch
          %195 = sbr.rel (%p193) target = $region32
        $region31: #{tpu_custom_call.1} parent=23 // pred_region
          %vm196 = vcmask 7168
          %197 = vst.msk [vmem:[%s186] sm:$0xff] %vm196, 0.0
          %198 = vst.msk [vmem:[%s186 + $0x8] sm:$0xff] %vm196, 0.0
          %199 = vst.msk [vmem:[%s186 + $0x10] sm:$0xff] %vm196, 0.0
          %200 = vst.msk [vmem:[%s186 + $0x18] sm:$0xff] %vm196, 0.0
          %201 = vst.msk [vmem:[%s186 + $0x20] sm:$0xff] %vm196, 0.0
          %202 = vst.msk [vmem:[%s186 + $0x28] sm:$0xff] %vm196, 0.0
          %203 = vst.msk [vmem:[%s186 + $0x30] sm:$0xff] %vm196, 0.0
          %204 = vst.msk [vmem:[%s186 + $0x38] sm:$0xff] %vm196, 0.0
          %205 = vst.msk [vmem:[%s191] sm:$0xff] %vm196, 0.0
          %206 = vst.msk [vmem:[%s191 + $0x8] sm:$0xff] %vm196, 0.0
          %207 = vst.msk [vmem:[%s191 + $0x10] sm:$0xff] %vm196, 0.0
          %208 = vst.msk [vmem:[%s191 + $0x18] sm:$0xff] %vm196, 0.0
          %209 = vst.msk [vmem:[%s191 + $0x20] sm:$0xff] %vm196, 0.0
          %210 = vst.msk [vmem:[%s191 + $0x28] sm:$0xff] %vm196, 0.0
          %211 = vst.msk [vmem:[%s191 + $0x30] sm:$0xff] %vm196, 0.0
          %212 = vst.msk [vmem:[%s191 + $0x38] sm:$0xff] %vm196, 0.0
        $region32: #{tpu_custom_call.1} parent=23 // pred_fallthru
          _
        %v213 = vld [vmem:[%s156] sm:$0xff]
        %v214 = vld [vmem:[%s156 + $0x8] sm:$0xff]
        %v215 = vld [vmem:[%s156 + $0x10] sm:$0xff]
        %v216 = vld [vmem:[%s156 + $0x18] sm:$0xff]
        %v217 = vld [vmem:[%s156 + $0x20] sm:$0xff]
        %v218 = vld [vmem:[%s156 + $0x28] sm:$0xff]
        %v219 = vld [vmem:[%s156 + $0x30] sm:$0xff]
        %v220 = vld [vmem:[%s156 + $0x38] sm:$0xff]
        %v221 = vld [vmem:[%s186] sm:$0xff]
        %v222 = vld [vmem:[%s186 + $0x8] sm:$0xff]
        %v223 = vld [vmem:[%s186 + $0x10] sm:$0xff]
        %v224 = vld [vmem:[%s186 + $0x18] sm:$0xff]
        %v225 = vld [vmem:[%s186 + $0x20] sm:$0xff]
        %v226 = vld [vmem:[%s186 + $0x28] sm:$0xff]
        %v227 = vld [vmem:[%s186 + $0x30] sm:$0xff]
        %v228 = vld [vmem:[%s186 + $0x38] sm:$0xff]
        %229 = vadd.xlane.f32.xlu0 %v213
        %v230 = vpop.xlane.xlu0 %229
        %231 = vadd.xlane.f32.xlu0 %v214
        %v232 = vpop.xlane.xlu0 %231
        %233 = vadd.xlane.f32.xlu0 %v215
        %v234 = vpop.xlane.xlu0 %233
        %235 = vadd.xlane.f32.xlu0 %v216
        %v236 = vpop.xlane.xlu0 %235
        %237 = vadd.xlane.f32.xlu0 %v217
        %v238 = vpop.xlane.xlu0 %237
        %239 = vadd.xlane.f32.xlu0 %v218
        %v240 = vpop.xlane.xlu0 %239
        %241 = vadd.xlane.f32.xlu0 %v219
        %v242 = vpop.xlane.xlu0 %241
        %243 = vadd.xlane.f32.xlu0 %v220
        %v244 = vpop.xlane.xlu0 %243
        %v245 = vadd.f32 %v221, %v230
        %v246 = vadd.f32 %v222, %v232
        %v247 = vadd.f32 %v223, %v234
        %v248 = vadd.f32 %v224, %v236
        %v249 = vadd.f32 %v225, %v238
        %v250 = vadd.f32 %v226, %v240
        %v251 = vadd.f32 %v227, %v242
        %v252 = vadd.f32 %v228, %v244
        %vm253 = vcmask 7168
        %254 = vst.msk [vmem:[%s186] sm:$0xff] %vm253, %v245
        %255 = vst.msk [vmem:[%s186 + $0x8] sm:$0xff] %vm253, %v246
        %256 = vst.msk [vmem:[%s186 + $0x10] sm:$0xff] %vm253, %v247
        %257 = vst.msk [vmem:[%s186 + $0x18] sm:$0xff] %vm253, %v248
        %258 = vst.msk [vmem:[%s186 + $0x20] sm:$0xff] %vm253, %v249
        %259 = vst.msk [vmem:[%s186 + $0x28] sm:$0xff] %vm253, %v250
        %260 = vst.msk [vmem:[%s186 + $0x30] sm:$0xff] %vm253, %v251
        %261 = vst.msk [vmem:[%s186 + $0x38] sm:$0xff] %vm253, %v252
        %v262 = vld [vmem:[%s191] sm:$0xff]
        %v263 = vld [vmem:[%s191 + $0x8] sm:$0xff]
        %v264 = vld [vmem:[%s191 + $0x10] sm:$0xff]
        %v265 = vld [vmem:[%s191 + $0x18] sm:$0xff]
        %v266 = vld [vmem:[%s191 + $0x20] sm:$0xff]
        %v267 = vld [vmem:[%s191 + $0x28] sm:$0xff]
        %v268 = vld [vmem:[%s191 + $0x30] sm:$0xff]
        %v269 = vld [vmem:[%s191 + $0x38] sm:$0xff]
        %v270 = vmul.f32 %v213, %v213
        %v271 = vmul.f32 %v214, %v214
        %v272 = vmul.f32 %v215, %v215
        %v273 = vmul.f32 %v216, %v216
        %v274 = vmul.f32 %v217, %v217
        %v275 = vmul.f32 %v218, %v218
        %v276 = vmul.f32 %v219, %v219
        %v277 = vmul.f32 %v220, %v220
        %278 = vadd.xlane.f32.xlu0 %v270
        %v279 = vpop.xlane.xlu0 %278
        %280 = vadd.xlane.f32.xlu0 %v271
        %v281 = vpop.xlane.xlu0 %280
        %282 = vadd.xlane.f32.xlu0 %v272
        %v283 = vpop.xlane.xlu0 %282
        %284 = vadd.xlane.f32.xlu0 %v273
        %v285 = vpop.xlane.xlu0 %284
        %286 = vadd.xlane.f32.xlu0 %v274
        %v287 = vpop.xlane.xlu0 %286
        %288 = vadd.xlane.f32.xlu0 %v275
        %v289 = vpop.xlane.xlu0 %288
        %290 = vadd.xlane.f32.xlu0 %v276
        %v291 = vpop.xlane.xlu0 %290
        %292 = vadd.xlane.f32.xlu0 %v277
        %v293 = vpop.xlane.xlu0 %292
        %v294 = vadd.f32 %v262, %v279
        %v295 = vadd.f32 %v263, %v281
        %v296 = vadd.f32 %v264, %v283
        %v297 = vadd.f32 %v265, %v285
        %v298 = vadd.f32 %v266, %v287
        %v299 = vadd.f32 %v267, %v289
        %v300 = vadd.f32 %v268, %v291
        %v301 = vadd.f32 %v269, %v293
        %302 = vst.msk [vmem:[%s191] sm:$0xff] %vm253, %v294
        %303 = vst.msk [vmem:[%s191 + $0x8] sm:$0xff] %vm253, %v295
        %304 = vst.msk [vmem:[%s191 + $0x10] sm:$0xff] %vm253, %v296
        %305 = vst.msk [vmem:[%s191 + $0x18] sm:$0xff] %vm253, %v297
        %306 = vst.msk [vmem:[%s191 + $0x20] sm:$0xff] %vm253, %v298
        %307 = vst.msk [vmem:[%s191 + $0x28] sm:$0xff] %vm253, %v299
        %308 = vst.msk [vmem:[%s191 + $0x30] sm:$0xff] %vm253, %v300
        %309 = vst.msk [vmem:[%s191 + $0x38] sm:$0xff] %vm253, %v301
        %p310 = scmp.lt.s32.totalorder %s21, 1
        %s311 = scalar_select %p310, %s21, 1
        %s312 = smul.addr %s311, 8
        %s313 = smul.addr %s312, 8
        %s314 = scalar_lea.vmem %s1, %s313
        %p315 = scmp.lt.s32.totalorder %s21, 1
        %s316 = scalar_select %p315, %s21, 1
        %s317 = smul.addr %s316, 8
        %s318 = smul.addr %s317, 8
        %s319 = scalar_lea.vmem %s2, %s318
        // Predicated region
        $region33: #{tpu_custom_call.1} parent=23 // pred_check
          %p320 = pneg %p75
        $region34: #{tpu_custom_call.1} parent=23 // pred_check_branch
          %322 = sbr.rel (%p320) target = $region36
        $region35: #{tpu_custom_call.1} parent=23 // pred_region
          _
        $region36: #{tpu_custom_call.1} parent=23 // pred_fallthru
          _
        // Predicated region
        $region37: #{tpu_custom_call.1} parent=23 // pred_check
          %p323 = pneg %p101
        $region38: #{tpu_custom_call.1} parent=23 // pred_check_branch
          %325 = sbr.rel (%p323) target = $region40
        $region39: #{tpu_custom_call.1} parent=23 // pred_region
          _
        $region40: #{tpu_custom_call.1} parent=23 // pred_fallthru
          _
      $region24: #{tpu_custom_call.1} parent=5 // pred_fallthru
        _
      %p326 = scmp.le.s32.totalorder 2, %s12
      // Predicated region
      $region41: #{tpu_custom_call.1} parent=5 // pred_check
        %p327 = pneg %p326
      $region42: #{tpu_custom_call.1} parent=5 // pred_check_branch
        %329 = sbr.rel (%p327) target = $region44
      $region43: #{tpu_custom_call.1} parent=5 // pred_region
        %s330 = ssub.s32 %s12, 2
        // Predicated region
        $region45: #{tpu_custom_call.1} parent=43 // pred_check
          %p331 = pneg %p81
        $region46: #{tpu_custom_call.1} parent=43 // pred_check_branch
          %333 = sbr.rel (%p331) target = $region48
        $region47: #{tpu_custom_call.1} parent=43 // pred_region
          %p334 = scmp.lt.s32.totalorder %s23, 1
          %s335 = scalar_select %p334, %s23, 1
          %s336 = smul.addr %s335, 8
          %s337 = smul.addr %s336, 8
          %s338 = scalar_lea.vmem %s1, %s337
        $region48: #{tpu_custom_call.1} parent=43 // pred_fallthru
          _
        // Predicated region
        $region49: #{tpu_custom_call.1} parent=43 // pred_check
          %p339 = pneg %p107
        $region50: #{tpu_custom_call.1} parent=43 // pred_check_branch
          %341 = sbr.rel (%p339) target = $region52
        $region51: #{tpu_custom_call.1} parent=43 // pred_region
          %p342 = scmp.lt.s32.totalorder %s23, 1
          %s343 = scalar_select %p342, %s23, 1
          %s344 = smul.addr %s343, 8
          %s345 = smul.addr %s344, 8
          %s346 = scalar_lea.vmem %s2, %s345
        $region52: #{tpu_custom_call.1} parent=43 // pred_fallthru
          _
      $region44: #{tpu_custom_call.1} parent=5 // pred_fallthru
        _
    $region6: #{tpu_custom_call.1} parent=1 // loop_footer
      %s16 = sadd.s32 1, %s12
    $region7: #{tpu_custom_call.1} parent=1 // loop_footer_branch
      %11 = sbr.rel target = $region3
    $region8: #{tpu_custom_call.1} parent=1 // loop_exit
      _
    %347 = vsyncpa [#allocation3], 1
    %s348 = scalar_lea.sflag [#allocation3], 1
    %349 = vsyncpa %s348, 1

</llo_original>
